<compile_context>
chip_gen: v6e
topology: v6e:2x2x1
jax: 0.10.0
libtpu: 0.0.40
codegen_flags: <defaults>
</compile_context>

<pallas_src>
import functools

import jax
import jax.numpy as jnp
from jax.experimental import pallas as pl
from jax.experimental.pallas import tpu as pltpu


VMEM_LIMIT = 48 * 1024 * 1024  # safe on v7x (64 MiB physical); ample on v5e/v6e


# ----------------------------------------------------------------------------
# Tiled linear (+ optional ReLU) kernel:  y = relu?(x @ W + b)
# x: (M, K) bf16, W: (K, N) bf16 (pre-transposed), b: (1, N) f32.
# ----------------------------------------------------------------------------
def _linear_kernel(x_ref, w_ref, b_ref, o_ref, *, relu):
    y = jnp.dot(x_ref[...], w_ref[...], preferred_element_type=jnp.float32)
    y = y + b_ref[...]
    if relu:
        y = jnp.maximum(y, 0.0)
    o_ref[...] = y.astype(o_ref.dtype)


def linear_pallas(x, w_t, b, *, relu=False, out_dtype=jnp.float32,
                  tm=512, tn=1024, n_major=False):
    """y = relu?(x @ w_t + b).

    n_major=True makes the N axis outermost in the grid so the (K, tn) weight
    block stays VMEM-resident across the inner M loop (weight-stationary).
    Used for the vocab projection so W_out is streamed from HBM only once.
    """
    M, K = x.shape
    N = w_t.shape[1]
    tm = min(tm, M)
    tn = min(tn, N)
    if n_major:
        grid = (pl.cdiv(N, tn), pl.cdiv(M, tm))
        x_map = lambda j, i: (i, 0)
        w_map = lambda j, i: (0, j)
        b_map = lambda j, i: (0, j)
        o_map = lambda j, i: (i, j)
    else:
        grid = (pl.cdiv(M, tm), pl.cdiv(N, tn))
        x_map = lambda i, j: (i, 0)
        w_map = lambda i, j: (0, j)
        b_map = lambda i, j: (0, j)
        o_map = lambda i, j: (i, j)
    return pl.pallas_call(
        functools.partial(_linear_kernel, relu=relu),
        grid_spec=pltpu.PrefetchScalarGridSpec(
            num_scalar_prefetch=0,
            grid=grid,
            in_specs=[
                pl.BlockSpec((tm, K), x_map),
                pl.BlockSpec((K, tn), w_map),
                pl.BlockSpec((1, tn), b_map),
            ],
            out_specs=pl.BlockSpec((tm, tn), o_map),
        ),
        out_shape=jax.ShapeDtypeStruct((M, N), out_dtype),
        compiler_params=pltpu.CompilerParams(
            dimension_semantics=("parallel", "parallel"),
            vmem_limit_bytes=VMEM_LIMIT),
    )(x, w_t, b)


# ----------------------------------------------------------------------------
# Single-layer LSTM recurrence, gridded over (batch chunks, time chunks).
# gates_x (= x @ W_ih + b_ih + b_hh) is precomputed outside in bf16; per step
# we only do h @ W_hh plus the elementwise gate math.  Gate column order is
# (i, f, o, g) -> one wide sigmoid + one tanh per step.  h/c live in VMEM
# scratch and persist across time chunks (init at time chunk 0).
# ----------------------------------------------------------------------------
def _lstm_kernel(gx_ref, h0_ref, c0_ref, whh_ref, out_ref, h_scr, c_scr,
                 *, chunk_len, hidden_size):
    H = hidden_size

    @pl.when(pl.program_id(1) == 0)
    def _():
        h_scr[...] = h0_ref[...]
        c_scr[...] = c0_ref[...]

    w_hh = whh_ref[...]                                   # (H, 4H) bf16

    @pl.loop(0, chunk_len)
    def _(t):
        h = h_scr[...]                                    # (Bc, H) f32
        c = c_scr[...]
        gates = gx_ref[t].astype(jnp.float32) + jnp.dot(
            h.astype(jnp.bfloat16), w_hh, preferred_element_type=jnp.float32)
        # Gate columns laid out (i, f, o, g): one sigmoid over 3H, one tanh.
        # NOTE: pick H % 128 == 0 in real configs so slices are lane-aligned.
        sig = jax.nn.sigmoid(gates[:, :3 * H])
        i_g = sig[:, 0 * H:1 * H]
        f_g = sig[:, 1 * H:2 * H]
        o_g = sig[:, 2 * H:3 * H]
        g_g = jnp.tanh(gates[:, 3 * H:])
        c_new = f_g * c + i_g * g_g
        h_new = o_g * jnp.tanh(c_new)
        out_ref[t] = h_new.astype(out_ref.dtype)
        h_scr[...] = h_new
        c_scr[...] = c_new


def _divisor_chunk(n, target):
    c = min(n, target)
    while n % c:
        c -= 1
    return c


def _batch_chunk(b, target):
    # Batch sub-blocks must stay sublane-aligned (multiple of 8) or be full.
    if b % 8 != 0 or b <= target:
        return b
    c = (min(b, target) // 8) * 8
    while c >= 8 and b % c:
        c -= 8
    return c if c >= 8 else b


def lstm_layer_pallas(gates_x, h0, c0, w_hh_t, *, time_chunk=8, batch_chunk=64):
    """gates_x: (T,B,4H) bf16 time-major; h0/c0: (B,H) f32;
    w_hh_t: (H,4H) bf16 with (i,f,o,g) column order.
    Returns hidden states (T,B,H) bf16."""
    T, B, _ = gates_x.shape
    H = h0.shape[1]
    tc = _divisor_chunk(T, time_chunk)
    bc = _batch_chunk(B, batch_chunk)
    grid = (B // bc, T // tc)
    return pl.pallas_call(
        functools.partial(_lstm_kernel, chunk_len=tc, hidden_size=H),
        grid_spec=pltpu.PrefetchScalarGridSpec(
            num_scalar_prefetch=0,
            grid=grid,
            in_specs=[
                pl.BlockSpec((tc, bc, 4 * H), lambda b, t: (t, b, 0)),
                pl.BlockSpec((bc, H), lambda b, t: (b, 0)),
                pl.BlockSpec((bc, H), lambda b, t: (b, 0)),
                pl.BlockSpec((H, 4 * H), lambda b, t: (0, 0)),
            ],
            out_specs=pl.BlockSpec((tc, bc, H), lambda b, t: (t, b, 0)),
            scratch_shapes=[
                pltpu.VMEM((bc, H), jnp.float32),   # h carry
                pltpu.VMEM((bc, H), jnp.float32),   # c carry
            ],
        ),
        out_shape=jax.ShapeDtypeStruct((T, B, H), jnp.bfloat16),
        compiler_params=pltpu.CompilerParams(
            # Batch axis is independent (megacore-shardable on v7x); time axis
            # carries the recurrence through the VMEM scratch -> "arbitrary".
            dimension_semantics=("parallel", "arbitrary"),
            vmem_limit_bytes=VMEM_LIMIT),
    )(gates_x, h0, c0, w_hh_t)


# ----------------------------------------------------------------------------
# Parameter construction (deterministic, PyTorch-shaped; matmul weights bf16).
# ----------------------------------------------------------------------------
def init_params(key, cnn_feature_size, vocab_size, embedding_size,
                hidden_size, num_layers, padding_idx):
    ks = jax.random.split(key, 8 + 4 * num_layers)
    k_iter = iter(ks)

    def unif(k, shape, bound):
        return jax.random.uniform(k, shape, jnp.float32, -bound, bound)

    LH = num_layers * hidden_size
    bh = 1.0 / jnp.sqrt(cnn_feature_size)
    bl = 1.0 / jnp.sqrt(hidden_size)

    params = {}
    # Fused hidden_projection + cell_projection: Linear(cnn_feature, 2*L*H).
    # (The reference applies ReLU to BOTH the hidden and cell projections.)
    params["W_hcp_t"] = unif(next(k_iter), (cnn_feature_size, 2 * LH),
                             bh).astype(jnp.bfloat16)
    params["b_hcp"] = unif(next(k_iter), (1, 2 * LH), bh)

    # Embedding (padding_idx row zeroed, like nn.Embedding).
    emb = jax.random.normal(next(k_iter), (vocab_size, embedding_size),
                            jnp.float32)
    emb = emb.at[padding_idx].set(0.0)
    params["embedding"] = emb.astype(jnp.bfloat16)

    def reorder_gates(m):
        # PyTorch LSTM gate order is (i, f, g, o); we lay columns out as
        # (i, f, o, g) so the kernel does one wide sigmoid + one tanh.
        # (When porting trained torch weights, apply this same permutation.)
        i, f, g, o = jnp.split(m, 4, axis=-1)
        return jnp.concatenate([i, f, o, g], axis=-1)

    # LSTM weights per layer (stored pre-transposed for the MXU: (in, 4H)).
    w_ih_t, w_hh_t, b_lstm = [], [], []
    for layer in range(num_layers):
        in_size = embedding_size if layer == 0 else hidden_size
        w_ih = unif(next(k_iter), (in_size, 4 * hidden_size), bl)
        w_hh = unif(next(k_iter), (hidden_size, 4 * hidden_size), bl)
        b_ih = unif(next(k_iter), (1, 4 * hidden_size), bl)
        b_hh = unif(next(k_iter), (1, 4 * hidden_size), bl)
        w_ih_t.append(reorder_gates(w_ih).astype(jnp.bfloat16))
        w_hh_t.append(reorder_gates(w_hh).astype(jnp.bfloat16))
        b_lstm.append(reorder_gates(b_ih + b_hh))
    params["w_ih_t"] = w_ih_t
    params["w_hh_t"] = w_hh_t
    params["b_lstm"] = b_lstm

    # out: Linear(hidden_size, vocab_size).
    params["W_out_t"] = unif(next(k_iter), (hidden_size, vocab_size),
                             bl).astype(jnp.bfloat16)
    params["b_out"] = unif(next(k_iter), (1, vocab_size), bl)
    return params


# ----------------------------------------------------------------------------
# CaptionNet forward.
# ----------------------------------------------------------------------------
def caption_net_forward(params, image_vectors, captions_ix,
                        num_layers, hidden_size):
    B, T = captions_ix.shape
    L, H = num_layers, hidden_size
    V = params["W_out_t"].shape[1]

    # Embedding lookup (gather) + eval-mode dropout (identity).
    # TODO(synk): fuse this gather into the first-layer gates matmul via
    # PrefetchScalarGridSpec + a pl.Element row BlockSpec to save the (B,T,E)
    # HBM round-trip.
    embedded = jnp.take(params["embedding"], captions_ix, axis=0)  # (B,T,E) bf16

    # Fused image-conditioned initial state: relu(Linear(image_vectors)) for
    # hidden AND cell (matches the reference) in ONE matmul.
    hc = linear_pallas(image_vectors.astype(jnp.bfloat16),
                       params["W_hcp_t"], params["b_hcp"],
                       relu=True)                                  # (B, 2LH) f32
    hidden = hc[:, :L * H].reshape(B, L, H).transpose(1, 0, 2)     # (L,B,H) f32
    cell = hc[:, L * H:].reshape(B, L, H).transpose(1, 0, 2)       # (L,B,H) f32

    # LSTM stack, time-major.  Per layer: one big tiled matmul for the
    # input-to-hidden gates (emitted bf16 to halve HBM traffic on the largest
    # intermediate), then the chunked recurrent kernel.
    x = embedded.transpose(1, 0, 2)                                # (T,B,E) bf16
    for layer in range(L):
        in_dim = x.shape[-1]
        gates_x = linear_pallas(x.reshape(T * B, in_dim),
                                params["w_ih_t"][layer],
                                params["b_lstm"][layer],
                                out_dtype=jnp.bfloat16)            # (T*B,4H) bf16
        gates_x = gates_x.reshape(T, B, 4 * H)
        x = lstm_layer_pallas(gates_x, hidden[layer], cell[layer],
                              params["w_hh_t"][layer])             # (T,B,H) bf16
        # (Inter-layer dropout is identity in eval mode.)

    # Vocab projection directly in (B,T,V) row order, weight-stationary so
    # W_out streams from HBM once; only the small hidden tensor is transposed.
    h_bt = x.transpose(1, 0, 2).reshape(B * T, H)                  # (B*T,H) bf16
    logits = linear_pallas(h_bt, params["W_out_t"], params["b_out"],
                           n_major=True)                           # (B*T,V) f32
    return logits.reshape(B, T, V)


if __name__ == "__main__":
    # Small config consistent with the module signature.
    cnn_feature_size = 32
    vocab_size = 32
    embedding_size = 32
    hidden_size = 32
    num_layers = 2
    padding_idx = 0
    B, T = 2, 8

    key = jax.random.PRNGKey(0)
    k_param, k_img, k_cap = jax.random.split(key, 3)

    params = init_params(k_param, cnn_feature_size, vocab_size,
                         embedding_size, hidden_size, num_layers, padding_idx)

    image_vectors = jax.random.normal(k_img, (B, cnn_feature_size),
                                      jnp.float32)
    captions_ix = jax.random.randint(k_cap, (B, T), 0, vocab_size,
                                     dtype=jnp.int32)

    logits = caption_net_forward(params, image_vectors, captions_ix,
                                 num_layers, hidden_size)
    logits = jax.block_until_ready(logits)

    assert logits.shape == (B, T, vocab_size)
    assert jnp.all(jnp.isfinite(logits))
    print("KERNEL_OK")
</pallas_src>

<mosaic_0001>
module attributes {stable_mosaic.version = 11 : i64} {
  func.func @_linear_kernel(%arg0: i32, %arg1: i32, %arg2: memref<2x32xbf16, #tpu.memory_space<vmem>>, %arg3: memref<32x128xbf16, #tpu.memory_space<vmem>>, %arg4: memref<1x128xf32, #tpu.memory_space<vmem>>, %arg5: memref<2x128xf32, #tpu.memory_space<vmem>>) attributes {dimension_semantics = [#tpu.dimension_semantics<parallel>, #tpu.dimension_semantics<parallel>], iteration_bounds = array<i64: 1, 1>, scalar_prefetch = 0 : i64, scratch_operands = 0 : i64, tpu.core_type = #tpu.core_type<tc>, window_params = [{transform_indices = @transform_0, window_bounds = array<i64: 2, 32>}, {transform_indices = @transform_1, window_bounds = array<i64: 32, 128>}, {transform_indices = @transform_2, window_bounds = array<i64: 1, 128>}, {transform_indices = @transform_3, window_bounds = array<i64: 2, 128>}]} {
    %c0 = arith.constant 0 : index
    %c0_0 = arith.constant 0 : index
    %0 = vector.load %arg2[%c0, %c0_0] : memref<2x32xbf16, #tpu.memory_space<vmem>>, vector<2x32xbf16>
    %c0_1 = arith.constant 0 : index
    %c0_2 = arith.constant 0 : index
    %1 = vector.load %arg3[%c0_1, %c0_2] : memref<32x128xbf16, #tpu.memory_space<vmem>>, vector<32x128xbf16>
    %cst = arith.constant dense<0.000000e+00> : vector<2x128xf32>
    %2 = tpu.matmul %0, %1, %cst {dimension_numbers = #tpu.dot_dimension_numbers<[1], [0], [0], [1], [0, 0, 1, 1], [], []>} : vector<2x32xbf16>, vector<32x128xbf16>, vector<2x128xf32> -> vector<2x128xf32>
    %c0_3 = arith.constant 0 : index
    %c0_4 = arith.constant 0 : index
    %3 = vector.load %arg4[%c0_3, %c0_4] : memref<1x128xf32, #tpu.memory_space<vmem>>, vector<1x128xf32>
    %4 = vector.broadcast %3 : vector<1x128xf32> to vector<2x128xf32>
    %5 = arith.addf %2, %4 : vector<2x128xf32>
    %cst_5 = arith.constant 0.000000e+00 : f32
    %6 = vector.broadcast %cst_5 : f32 to vector<2x128xf32>
    %7 = arith.maximumf %5, %6 : vector<2x128xf32>
    %c0_6 = arith.constant 0 : index
    %c0_7 = arith.constant 0 : index
    %8 = vector.load %arg5[%c0_6, %c0_7] : memref<2x128xf32, #tpu.memory_space<vmem>>, vector<2x128xf32>
    tpu.vector_store %arg5[%c0_6, %c0_7], %7 {strides = array<i32>} : memref<2x128xf32, #tpu.memory_space<vmem>>, vector<2x128xf32>,
    return
  }
  func.func @transform_0(%arg0: i32, %arg1: i32) -> (i32, i32) {
    %c0_i32 = arith.constant 0 : i32
    %c0_i32_0 = arith.constant 0 : i32
    return %arg0, %c0_i32 : i32, i32
  }
  func.func @transform_1(%arg0: i32, %arg1: i32) -> (i32, i32) {
    %c0_i32 = arith.constant 0 : i32
    %c0_i32_0 = arith.constant 0 : i32
    return %c0_i32, %arg1 : i32, i32
  }
  func.func @transform_2(%arg0: i32, %arg1: i32) -> (i32, i32) {
    %c0_i32 = arith.constant 0 : i32
    %c0_i32_0 = arith.constant 0 : i32
    return %c0_i32, %arg1 : i32, i32
  }
  func.func @transform_3(%arg0: i32, %arg1: i32) -> (i32, i32) {
    %c0_i32 = arith.constant 0 : i32
    return %arg0, %arg1 : i32, i32
  }
}

</mosaic_0001>

<llo_original>
// kernel: tpu_custom_call.1
$region0: #{tpu_custom_call.1}
  #allocation0 [shape = 'u32[]', space=smem, size = 0x4, offset = 0x4, fixed_abs, tag = 'smem constant byte address 0x4 - core index']
  #allocation1 [shape = 'u32[144,128]{1,0:T(1,128)}', space=vmem, size = 0x12000, scoped, tag = 'internal scratch']
  %s0 = inlined_call_operand.hbm [shape: bf16[2,32], index: 0, kind: input, shape index: {}]
  %s1 = inlined_call_operand.hbm [shape: bf16[32,128], index: 1, kind: input, shape index: {}]
  %s2 = inlined_call_operand.vmem [shape: f32[1,128], index: 2, kind: input, shape index: {}]
  %s3 = inlined_call_operand.hbm [shape: f32[2,128], index: 3, kind: output, shape index: {}]
  %s4 = sld [smem:[#allocation0]]
  $region30: #{tpu_custom_call.1} parent=0
    _
  %s6 = ssub.s32 1, %s4
  %s7 = scalar_select 0, %s6, %s4
  $region1: #{tpu_custom_call.1} parent=0
    #allocation2 [shape = 'u8[512]{0}', space=vmem, size = 0x400, scoped, tag = 'input window, operand 0, single buffered']
    #allocation3 [shape = 's32[1]{0}', space=sflag, size = 0x4, scoped, tag = 'scoped memory for tpu_custom_call.1']
    #allocation4 [shape = 's32[1]{0}', space=sflag, size = 0x4, scoped, tag = 'scoped memory for tpu_custom_call.1']
    #allocation5 [shape = 'u8[8192]{0}', space=vmem, size = 0x2000, scoped, tag = 'input window, operand 1, single buffered']
    #allocation6 [shape = 's32[1]{0}', space=sflag, size = 0x4, scoped, tag = 'scoped memory for tpu_custom_call.1']
    #allocation7 [shape = 'u8[1024]{0}', space=vmem, size = 0x400, scoped, tag = 'output window, operand 0, single buffered']
    %8 = vsyncpa [#allocation3], 0
    %9 = vsyncpa [#allocation6], 0
    %10 = vsyncpa [#allocation4], 0
    // Predicated region
    $region2: #{tpu_custom_call.1} parent=1 // pred_check
      _
    $region3: #{tpu_custom_call.1} parent=1 // pred_check_branch
      %12 = sbr.rel (0) target = $region5
    $region4: #{tpu_custom_call.1} parent=1 // pred_region
      %s14 = ssub.s32 16, 16
      %15 = vsyncadd [#allocation3], %s14
      %s17 = sshll.u32 [#allocation2], 4
      %s18 = int_to_ptr.vmem [resolvable:$true] %s17
      %20 = dma.hbm_to_vmem [thread:$0]  %s0, 16, %s18, [#allocation3]
    $region5: #{tpu_custom_call.1} parent=1 // pred_fallthru
      _
    // Predicated region
    $region6: #{tpu_custom_call.1} parent=1 // pred_check
      _
    $region7: #{tpu_custom_call.1} parent=1 // pred_check_branch
      %22 = sbr.rel (0) target = $region9
    $region8: #{tpu_custom_call.1} parent=1 // pred_region
      %s24 = ssub.s32 256, 256
      %25 = vsyncadd [#allocation6], %s24
      %s26 = sshll.u32 [#allocation5], 4
      %s27 = int_to_ptr.vmem [resolvable:$true] %s26
      %32 = dma.hbm_to_vmem [thread:$0]  %s1, 256, %s27, [#allocation6], 64, 64, 4
    $region9: #{tpu_custom_call.1} parent=1 // pred_fallthru
      _
    // Predicated region
    $region10: #{tpu_custom_call.1} parent=1 // pred_check
      _
    $region11: #{tpu_custom_call.1} parent=1 // pred_check_branch
      %34 = sbr.rel (0) target = $region13
    $region12: #{tpu_custom_call.1} parent=1 // pred_region
      _
    $region13: #{tpu_custom_call.1} parent=1 // pred_fallthru
      _
    // Predicated region
    $region14: #{tpu_custom_call.1} parent=1 // pred_check
      _
    $region15: #{tpu_custom_call.1} parent=1 // pred_check_branch
      %36 = sbr.rel (0) target = $region17
    $region16: #{tpu_custom_call.1} parent=1 // pred_region
      %37 = dma.done [#allocation3], 16
    $region17: #{tpu_custom_call.1} parent=1 // pred_fallthru
      _
    // Predicated region
    $region18: #{tpu_custom_call.1} parent=1 // pred_check
      _
    $region19: #{tpu_custom_call.1} parent=1 // pred_check_branch
      %39 = sbr.rel (0) target = $region21
    $region20: #{tpu_custom_call.1} parent=1 // pred_region
      %40 = dma.done [#allocation6], 256
    $region21: #{tpu_custom_call.1} parent=1 // pred_fallthru
      _
    %v42 = vld [vmem:[#allocation2] sm:$0x1]
    %v43 = vld [vmem:[#allocation5] sm:$0xf]
    %v44 = vld [vmem:[#allocation5 + $0x4] sm:$0xf]
    %v45 = vld [vmem:[#allocation5 + $0x8] sm:$0xf]
    %v46 = vld [vmem:[#allocation5 + $0xc] sm:$0xf]
    %v47 = vld [vmem:[%s2] sm:$0x1]
    %v49 = vlaneseq
    %v50 = vshrl.u32 %v49, 7
    %v51 = vsub.s32 0, %v50
    %v52 = vrot.slane %v47, %v51
    %v58 = vunpack.c.l.b16 %v43
    %v59 = vunpack.c.l.b16 %v44
    %v60 = vunpack.c.l.b16 %v45
    %v61 = vunpack.c.l.b16 %v46
    %v62 = vpack.c.b16 %v59, %v58
    %v63 = vpack.c.b16 %v61, %v60
    %vm66 = vcmask 261120
    %v68 = vsel %vm66, %v42, 0
    %70 = vmatprep.subr.bf16.mxu0 0
    %71 = vmatpush1.bf16.msra.mxu0 0
    %72 = vmatprep.subr.bf16.mxu0 0
    %73 = vmatpush1.bf16.msra.mxu0 0
    %74 = vmatprep.subr.bf16.mxu0 0
    %75 = vmatpush1.bf16.msra.mxu0 0
    %76 = vmatprep.subr.bf16.mxu0 0
    %77 = vmatpush1.bf16.msra.mxu0 0
    %78 = vmatprep.subr.bf16.mxu0 0
    %79 = vmatpush1.bf16.msra.mxu0 0
    %80 = vmatprep.subr.bf16.mxu0 0
    %81 = vmatpush1.bf16.msra.mxu0 0
    %82 = vmatprep.subr.bf16.mxu0 0
    %83 = vmatpush1.bf16.msra.mxu0 %v63
    %84 = vmatprep.subr.bf16.mxu0 0
    %85 = vmatpush1.bf16.msra.mxu0 %v62
    %86 = vmatprep.subr.bf16.mxu0 0
    %87 = vmatpush2.bf16.msra.mxu0 0
    %88 = vmatprep.subr.bf16.mxu0 0
    %89 = vmatpush2.bf16.msra.mxu0 0
    %90 = vmatprep.subr.bf16.mxu0 0
    %91 = vmatpush2.bf16.msra.mxu0 0
    %92 = vmatprep.subr.bf16.mxu0 0
    %93 = vmatpush2.bf16.msra.mxu0 0
    %94 = vmatprep.subr.bf16.mxu0 0
    %95 = vmatpush2.bf16.msra.mxu0 0
    %96 = vmatprep.subr.bf16.mxu0 0
    %97 = vmatpush2.bf16.msra.mxu0 0
    %98 = vmatprep.subr.bf16.mxu0 0
    %99 = vmatpush2.bf16.msra.mxu0 0
    %100 = vmatprep.subr.bf16.mxu0 0
    %101 = vmatpush2.bf16.msra.mxu0 0
    %102 = vmatprep.mubr.bf16.mxu0 0
    %103 = vmatmul.mubr.bf16.gmra.mxu0 %v68
    %v104 = vpop.f32.mrf.mxu0
    %v105 = vadd.f32 %v52, %v104
    %v106 = vpop.f32.mrf.mxu0
    %v107 = vpop.f32.mrf.mxu0
    %v108 = vpop.f32.mrf.mxu0
    %109 = vdwg.mxu0
    %v110 = vmax.f32 %v105, 0.0
    %111 = vst [vmem:[#allocation7] sm:$0x3] %v110
    // Predicated region
    $region22: #{tpu_custom_call.1} parent=1 // pred_check
      _
    $region23: #{tpu_custom_call.1} parent=1 // pred_check_branch
      %113 = sbr.rel (0) target = $region25
    $region24: #{tpu_custom_call.1} parent=1 // pred_region
      %s115 = ssub.s32 32, 32
      %116 = vsyncadd [#allocation4], %s115
      %s118 = sshll.u32 [#allocation7], 4
      %s119 = int_to_ptr.vmem [resolvable:$true] %s118
      %121 = dma.vmem_to_hbm [thread:$0]  %s119, 32, %s3, [#allocation4]
    $region25: #{tpu_custom_call.1} parent=1 // pred_fallthru
      _
    // Predicated region
    $region26: #{tpu_custom_call.1} parent=1 // pred_check
      _
    $region27: #{tpu_custom_call.1} parent=1 // pred_check_branch
      %123 = sbr.rel (0) target = $region29
    $region28: #{tpu_custom_call.1} parent=1 // pred_region
      %124 = dma.done [#allocation4], 32
    $region29: #{tpu_custom_call.1} parent=1 // pred_fallthru
      _
    %125 = vsyncpa [#allocation3], 1
    %126 = vsyncpa [#allocation6], 1
    %127 = vsyncpa [#allocation4], 1

</llo_original>
